<compile_context>
chip_gen: v6e
topology: v6e:2x2x1
jax: 0.10.0
libtpu: 0.0.40
codegen_flags: <defaults>
</compile_context>

<pallas_src>
import functools

import jax
import jax.numpy as jnp
from jax.experimental import pallas as pl
from jax.experimental.pallas import tpu as pltpu


def _self_output_kernel(x_ref, w_ref, params_ref, res_ref, o_ref, *,
                        eps, inv_h, matmul_dtype):
    # Cast the activation tile to the MXU dtype inside the kernel (no extra
    # wrapper-side HBM pass); W arrives already in the MXU dtype.
    x = x_ref[...].astype(matmul_dtype)
    # Dense: x @ W (W stored [in, out] == torch weight.T), f32 MXU accumulation.
    h = jnp.dot(x, w_ref[...], preferred_element_type=jnp.float32)

    p = params_ref[...]                    # (3, H) f32: [bias; gamma; beta]
    bias, gamma, beta = p[0], p[1], p[2]

    # Bias + residual folded into one f32 add chain (dropout = identity).
    y = h + bias + res_ref[...].astype(jnp.float32)

    # One-pass LayerNorm statistics over the hidden (lane) axis:
    #   mean = E[y], var = E[y^2] - mean^2   (single VPU pass over the tile)
    row_sum = jnp.sum(y, axis=-1, keepdims=True)
    row_sumsq = jnp.sum(y * y, axis=-1, keepdims=True)
    mean = row_sum * inv_h
    var = jnp.maximum(row_sumsq * inv_h - mean * mean, 0.0)
    norm = (y - mean) * jax.lax.rsqrt(var + eps)

    o_ref[...] = (norm * gamma + beta).astype(o_ref.dtype)


def _round_up(x, m):
    return ((x + m - 1) // m) * m


def _pick_row_block(m):
    # Amortize per-step pipeline overhead (bigger tiles, up to 512) while
    # keeping >= 2 grid blocks so the "parallel" row axis shards across both
    # v7x TensorCores. Always a multiple of 8 (sublane constraint).
    return int(min(512, max(8, _round_up(pl.cdiv(m, 2), 8))))


def _default_vmem_limit():
    # Generation-aware VMEM budget: leave headroom below physical capacity
    # (v7x: 64 MiB/TC -> ~48 MiB; v5e/v6e: 128 MiB -> 96 MiB).
    try:
        cap = pltpu.get_tpu_info().vmem_capacity_bytes
        return int(min(cap - 16 * 1024 * 1024, 96 * 1024 * 1024))
    except Exception:
        return 64 * 1024 * 1024


def _const_spec(shape):
    # Constant-index operands are DMA'd only once; single-buffer them so they
    # do not pay 2x resident VMEM under the default double-buffered pipeline.
    idx = lambda i: (0,) * len(shape)
    try:
        return pl.BlockSpec(shape, idx, pipeline_mode=pl.Buffered(1))
    except TypeError:  # older jax without the pipeline_mode kwarg
        return pl.BlockSpec(shape, idx)


def transformer_self_output(hidden_states, input_tensor, w, b, gamma, beta,
                            *, eps=1e-12, row_block=None,
                            matmul_dtype=jnp.bfloat16,
                            vmem_limit_bytes=None):
    """hidden_states, input_tensor: [B, S, H]; w: [H, H] (in, out); b/gamma/beta: [H]."""
    B, S, H = hidden_states.shape
    M = B * S
    out_dtype = hidden_states.dtype

    if row_block is None:
        row_block = _pick_row_block(M)
    if vmem_limit_bytes is None:
        vmem_limit_bytes = _default_vmem_limit()

    # Flatten rows. Activations / residual stay in the caller's dtype (matmul
    # cast happens in-kernel); the weight is cast once to the MXU dtype.
    x2 = hidden_states.reshape(M, H)
    r2 = input_tensor.reshape(M, H)
    w_c = w.astype(matmul_dtype)
    params = jnp.stack([b, gamma, beta]).astype(jnp.float32)   # (3, H)

    # cdiv grid; the ragged last row block (if any) is handled by Pallas'
    # masked boundary writes -- no jnp.pad / output-slice HBM passes.
    num_blocks = pl.cdiv(M, row_block)

    kernel = functools.partial(_self_output_kernel, eps=eps, inv_h=1.0 / H,
                               matmul_dtype=matmul_dtype)

    out = pl.pallas_call(
        kernel,
        out_shape=jax.ShapeDtypeStruct((M, H), out_dtype),
        grid_spec=pltpu.PrefetchScalarGridSpec(
            num_scalar_prefetch=0,
            grid=(num_blocks,),
            in_specs=[
                pl.BlockSpec((row_block, H), lambda i: (i, 0)),  # x tile (native dtype)
                _const_spec((H, H)),                             # resident W (bf16, 1-buffered)
                _const_spec((3, H)),                             # stacked bias/gamma/beta (f32)
                pl.BlockSpec((row_block, H), lambda i: (i, 0)),  # residual tile
            ],
            out_specs=pl.BlockSpec((row_block, H), lambda i: (i, 0)),
        ),
        compiler_params=pltpu.CompilerParams(
            dimension_semantics=("parallel",),
            vmem_limit_bytes=vmem_limit_bytes),
    )(x2, w_c, params, r2)

    return out.reshape(B, S, H)


def reference(hidden_states, input_tensor, w, b, gamma, beta, eps=1e-12,
              matmul_dtype=jnp.bfloat16):
    B, S, H = hidden_states.shape
    h = jnp.dot(hidden_states.reshape(-1, H).astype(matmul_dtype),
                w.astype(matmul_dtype),
                preferred_element_type=jnp.float32).reshape(B, S, H)
    y = h + b.astype(jnp.float32) + input_tensor.astype(jnp.float32)
    mean = jnp.mean(y, axis=-1, keepdims=True)
    var = jnp.mean(jnp.square(y - mean), axis=-1, keepdims=True)
    out = (y - mean) * jax.lax.rsqrt(var + eps) * gamma + beta
    return out.astype(hidden_states.dtype)


def _make_params(key, H):
    k3, k4, k5, k6 = jax.random.split(key, 4)
    w = jax.random.normal(k3, (H, H), dtype=jnp.float32) * (1.0 / jnp.sqrt(H))
    b = jax.random.normal(k4, (H,), dtype=jnp.float32) * 0.02
    gamma = jnp.ones((H,), dtype=jnp.float32) + 0.01 * jax.random.normal(
        k5, (H,), dtype=jnp.float32)
    beta = 0.01 * jax.random.normal(k6, (H,), dtype=jnp.float32)
    return w, b, gamma, beta


if __name__ == "__main__":
    key = jax.random.PRNGKey(0)

    # --- Test 1: small module-consistent shape (B=2, S=8, H=32).
    #     Auto row_block -> 8, grid=2 (exercises the multi-block + full-H-block path). ---
    B, S, H = 2, 8, 32
    k1, k2, kp = jax.random.split(key, 3)
    hidden_states = jax.random.normal(k1, (B, S, H), dtype=jnp.float32)
    input_tensor = jax.random.normal(k2, (B, S, H), dtype=jnp.float32)
    w, b, gamma, beta = _make_params(kp, H)

    out = transformer_self_output(hidden_states, input_tensor, w, b, gamma, beta)
    out = jax.block_until_ready(out)
    ref = reference(hidden_states, input_tensor, w, b, gamma, beta)
    assert out.shape == (B, S, H)
    assert jnp.allclose(out, ref, atol=1e-3, rtol=1e-3), "mismatch vs reference (test 1)"

    # --- Test 2: lane-dense H=128, M=400 with row_block=256 -> ragged last block
    #     (exercises the masked boundary-write path, no padding copies). ---
    B2, S2, H2 = 2, 200, 128
    k1b, k2b, kpb = jax.random.split(jax.random.PRNGKey(1), 3)
    hs2 = jax.random.normal(k1b, (B2, S2, H2), dtype=jnp.float32)
    it2 = jax.random.normal(k2b, (B2, S2, H2), dtype=jnp.float32)
    w2, b2, g2, be2 = _make_params(kpb, H2)

    out2 = transformer_self_output(hs2, it2, w2, b2, g2, be2, row_block=256)
    out2 = jax.block_until_ready(out2)
    ref2 = reference(hs2, it2, w2, b2, g2, be2)
    assert out2.shape == (B2, S2, H2)
    assert jnp.allclose(out2, ref2, atol=1e-3, rtol=1e-3), "mismatch vs reference (test 2)"

    print("KERNEL_OK")
</pallas_src>

<mosaic_0001>
module attributes {stable_mosaic.version = 11 : i64} {
  func.func @_self_output_kernel(%arg0: i32, %arg1: memref<8x32xf32, #tpu.memory_space<vmem>>, %arg2: memref<32x32xbf16, #tpu.memory_space<vmem>>, %arg3: memref<3x32xf32, #tpu.memory_space<vmem>>, %arg4: memref<8x32xf32, #tpu.memory_space<vmem>>, %arg5: memref<8x32xf32, #tpu.memory_space<vmem>>) attributes {dimension_semantics = [#tpu.dimension_semantics<parallel>], iteration_bounds = array<i64: 2>, scalar_prefetch = 0 : i64, scratch_operands = 0 : i64, tpu.core_type = #tpu.core_type<tc>, window_params = [{transform_indices = @transform_0, window_bounds = array<i64: 8, 32>}, {pipeline_mode = #tpu.pipeline_mode<synchronous>, transform_indices = @transform_1, window_bounds = array<i64: 32, 32>}, {pipeline_mode = #tpu.pipeline_mode<synchronous>, transform_indices = @transform_2, window_bounds = array<i64: 3, 32>}, {transform_indices = @transform_3, window_bounds = array<i64: 8, 32>}, {transform_indices = @transform_4, window_bounds = array<i64: 8, 32>}]} {
    %c0 = arith.constant 0 : index
    %c0_0 = arith.constant 0 : index
    %0 = vector.load %arg1[%c0, %c0_0] : memref<8x32xf32, #tpu.memory_space<vmem>>, vector<8x32xf32>
    %1 = arith.truncf %0 : vector<8x32xf32> to vector<8x32xbf16>
    %c0_1 = arith.constant 0 : index
    %c0_2 = arith.constant 0 : index
    %2 = vector.load %arg2[%c0_1, %c0_2] : memref<32x32xbf16, #tpu.memory_space<vmem>>, vector<32x32xbf16>
    %cst = arith.constant dense<0.000000e+00> : vector<8x32xf32>
    %3 = tpu.matmul %1, %2, %cst {dimension_numbers = #tpu.dot_dimension_numbers<[1], [0], [0], [1], [0, 0, 1, 1], [], []>} : vector<8x32xbf16>, vector<32x32xbf16>, vector<8x32xf32> -> vector<8x32xf32>
    %c0_3 = arith.constant 0 : index
    %c0_4 = arith.constant 0 : index
    %4 = vector.load %arg3[%c0_3, %c0_4] : memref<3x32xf32, #tpu.memory_space<vmem>>, vector<3x32xf32>
    %5 = vector.extract_strided_slice %4 {offsets = [0, 0], sizes = [1, 32], strides = [1, 1]} : vector<3x32xf32> to vector<1x32xf32>
    %6 = vector.shape_cast %5 : vector<1x32xf32> to vector<32xf32>
    %7 = vector.extract_strided_slice %4 {offsets = [1, 0], sizes = [1, 32], strides = [1, 1]} : vector<3x32xf32> to vector<1x32xf32>
    %8 = vector.shape_cast %7 : vector<1x32xf32> to vector<32xf32>
    %9 = vector.extract_strided_slice %4 {offsets = [2, 0], sizes = [1, 32], strides = [1, 1]} : vector<3x32xf32> to vector<1x32xf32>
    %10 = vector.shape_cast %9 : vector<1x32xf32> to vector<32xf32>
    %11 = vector.shape_cast %6 : vector<32xf32> to vector<1x32xf32>
    %12 = vector.broadcast %11 : vector<1x32xf32> to vector<8x32xf32>
    %13 = arith.addf %3, %12 : vector<8x32xf32>
    %c0_5 = arith.constant 0 : index
    %c0_6 = arith.constant 0 : index
    %14 = vector.load %arg4[%c0_5, %c0_6] : memref<8x32xf32, #tpu.memory_space<vmem>>, vector<8x32xf32>
    %15 = arith.addf %13, %14 : vector<8x32xf32>
    %cst_7 = arith.constant dense<0.000000e+00> : vector<8xf32>
    %16 = vector.multi_reduction <add>, %15, %cst_7 [1] : vector<8x32xf32> to vector<8xf32>
    %17 = vector.shape_cast %16 : vector<8xf32> to vector<8x1xf32>
    %18 = arith.mulf %15, %15 : vector<8x32xf32>
    %cst_8 = arith.constant dense<0.000000e+00> : vector<8xf32>
    %19 = vector.multi_reduction <add>, %18, %cst_8 [1] : vector<8x32xf32> to vector<8xf32>
    %20 = vector.shape_cast %19 : vector<8xf32> to vector<8x1xf32>
    %cst_9 = arith.constant 3.125000e-02 : f32
    %21 = vector.broadcast %cst_9 : f32 to vector<8x1xf32>
    %22 = arith.mulf %17, %21 : vector<8x1xf32>
    %cst_10 = arith.constant 3.125000e-02 : f32
    %23 = vector.broadcast %cst_10 : f32 to vector<8x1xf32>
    %24 = arith.mulf %20, %23 : vector<8x1xf32>
    %25 = arith.mulf %22, %22 : vector<8x1xf32>
    %26 = arith.subf %24, %25 : vector<8x1xf32>
    %cst_11 = arith.constant 0.000000e+00 : f32
    %27 = vector.broadcast %cst_11 : f32 to vector<8x1xf32>
    %28 = arith.maximumf %26, %27 : vector<8x1xf32>
    %29 = vector.broadcast %22 : vector<8x1xf32> to vector<8x32xf32>
    %30 = arith.subf %15, %29 : vector<8x32xf32>
    %cst_12 = arith.constant 9.99999996E-13 : f32
    %31 = vector.broadcast %cst_12 : f32 to vector<8x1xf32>
    %32 = arith.addf %28, %31 : vector<8x1xf32>
    %33 = math.rsqrt %32 : vector<8x1xf32>
    %34 = vector.broadcast %33 : vector<8x1xf32> to vector<8x32xf32>
    %35 = arith.mulf %30, %34 : vector<8x32xf32>
    %36 = vector.shape_cast %8 : vector<32xf32> to vector<1x32xf32>
    %37 = vector.broadcast %36 : vector<1x32xf32> to vector<8x32xf32>
    %38 = arith.mulf %35, %37 : vector<8x32xf32>
    %39 = vector.shape_cast %10 : vector<32xf32> to vector<1x32xf32>
    %40 = vector.broadcast %39 : vector<1x32xf32> to vector<8x32xf32>
    %41 = arith.addf %38, %40 : vector<8x32xf32>
    %c0_13 = arith.constant 0 : index
    %c0_14 = arith.constant 0 : index
    %42 = vector.load %arg5[%c0_13, %c0_14] : memref<8x32xf32, #tpu.memory_space<vmem>>, vector<8x32xf32>
    tpu.vector_store %arg5[%c0_13, %c0_14], %41 {strides = array<i32>} : memref<8x32xf32, #tpu.memory_space<vmem>>, vector<8x32xf32>,
    return
  }
  func.func @transform_0(%arg0: i32) -> (i32, i32) {
    %c0_i32 = arith.constant 0 : i32
    %c0_i32_0 = arith.constant 0 : i32
    return %arg0, %c0_i32 : i32, i32
  }
  func.func @transform_1(%arg0: i32) -> (i32, i32) {
    %c0_i32 = arith.constant 0 : i32
    %c0_i32_0 = arith.constant 0 : i32
    %c0_i32_1 = arith.constant 0 : i32
    return %c0_i32, %c0_i32_0 : i32, i32
  }
  func.func @transform_2(%arg0: i32) -> (i32, i32) {
    %c0_i32 = arith.constant 0 : i32
    %c0_i32_0 = arith.constant 0 : i32
    %c0_i32_1 = arith.constant 0 : i32
    return %c0_i32, %c0_i32_0 : i32, i32
  }
  func.func @transform_3(%arg0: i32) -> (i32, i32) {
    %c0_i32 = arith.constant 0 : i32
    %c0_i32_0 = arith.constant 0 : i32
    return %arg0, %c0_i32 : i32, i32
  }
  func.func @transform_4(%arg0: i32) -> (i32, i32) {
    %c0_i32 = arith.constant 0 : i32
    %c0_i32_0 = arith.constant 0 : i32
    return %arg0, %c0_i32 : i32, i32
  }
}

</mosaic_0001>

<llo_original>
// kernel: tpu_custom_call.1
$region0: #{tpu_custom_call.1}
  #allocation0 [shape = 'u32[]', space=smem, size = 0x4, offset = 0x4, fixed_abs, tag = 'smem constant byte address 0x4 - core index']
  #allocation1 [shape = 'u32[144,128]{1,0:T(1,128)}', space=vmem, size = 0x12000, scoped, tag = 'internal scratch']
  %s0 = inlined_call_operand.hbm [shape: f32[16,32], index: 0, kind: input, shape index: {}]
  %s1 = inlined_call_operand.hbm [shape: bf16[32,32], index: 1, kind: input, shape index: {}]
  %s2 = inlined_call_operand.hbm [shape: f32[3,32], index: 2, kind: input, shape index: {}]
  %s3 = inlined_call_operand.hbm [shape: f32[16,32], index: 3, kind: input, shape index: {}]
  %s4 = inlined_call_operand.hbm [shape: f32[16,32], index: 4, kind: output, shape index: {}]
  %s5 = sld [smem:[#allocation0]]
  $region65: #{tpu_custom_call.1} parent=0
    _
  %s7 = ssub.s32 1, %s5
  %s8 = scalar_select 0, %s7, %s5
  $region1: #{tpu_custom_call.1} parent=0
    #allocation2 [shape = 'u8[8192]{0}', space=vmem, size = 0x2000, scoped, tag = 'input window, operand 0']
    #allocation3 [shape = 's32[2]{0}', space=sflag, size = 0x8, scoped, tag = 'scoped memory for tpu_custom_call.1']
    #allocation4 [shape = 's32[2]{0}', space=sflag, size = 0x8, scoped, tag = 'scoped memory for tpu_custom_call.1']
    #allocation5 [shape = 'u8[8192]{0}', space=vmem, size = 0x2000, scoped, tag = 'input window, operand 1, single buffered']
    #allocation6 [shape = 's32[1]{0}', space=sflag, size = 0x4, scoped, tag = 'scoped memory for tpu_custom_call.1']
    #allocation7 [shape = 'u8[2048]{0}', space=vmem, size = 0x800, scoped, tag = 'input window, operand 2, single buffered']
    #allocation8 [shape = 'u8[8192]{0}', space=vmem, size = 0x2000, scoped, tag = 'input window, operand 3']
    #allocation9 [shape = 's32[2]{0}', space=sflag, size = 0x8, scoped, tag = 'scoped memory for tpu_custom_call.1']
    #allocation10 [shape = 'u8[8192]{0}', space=vmem, size = 0x2000, scoped, tag = 'output window, operand 0']
    %9 = vsyncpa [#allocation3], 0
    %s10 = scalar_lea.sflag [#allocation3], 1
    %11 = vsyncpa %s10, 0
    %12 = vsyncpa [#allocation6], 0
    %13 = vsyncpa [#allocation9], 0
    %s14 = scalar_lea.sflag [#allocation9], 1
    %15 = vsyncpa %s14, 0
    %16 = vsyncpa [#allocation4], 0
    %s17 = scalar_lea.sflag [#allocation4], 1
    %18 = vsyncpa %s17, 0
    loop: start=0, step=1, limit=4
    $region2: #{tpu_custom_call.1} parent=1 // loop_pre_header
      _
    $region3: #{tpu_custom_call.1} parent=1 // loop_header
      %s20 = sphi 0, %s24
      %p21 = scmp.ge.s32.totalorder %s20, 4
      %s30 = sphi 0, %s32
      %s33 = sphi 0, %s30
      %s34 = sphi 0, %s33
      %s50 = sphi 0, %s34
      %s54 = sphi 0, %s54
      %s56 = sphi 0, %s54
      %s57 = sphi 0, %s56
      %s71 = sphi 0, %s57
      %s75 = sphi 0, %s75
      %s77 = sphi 0, %s75
      %s78 = sphi 0, %s77
      %s92 = sphi 0, %s78
      %s98 = sphi 0, %s100
      %s101 = sphi 0, %s98
      %s102 = sphi 0, %s101
      %s118 = sphi 0, %s102
      %s124 = sphi 0, %s126
      %s127 = sphi 0, %s124
      %s128 = sphi 0, %s127
      %s144 = sphi 0, %s128
    $region4: #{tpu_custom_call.1} parent=1 // loop_header_branch
      %23 = sbr.rel (%p21) target = $region8
    $region5: #{tpu_custom_call.1} parent=1 // loop_body
      %s25 = ssub.s32 %s20, 1
      %s26 = ssub.s32 %s20, 2
      %s27 = sadd.s32 %s20, 1
      %s28 = ssub.s32 %s20, %s27
      %p29 = scmp.eq.s32.totalorder %s28, 0
      %s31 = sadd.s32 %s30, 1
      %s32 = scalar_select %p29, %s30, %s31
      %p35 = pneg %p29
      %p36 = scmp.eq.s32.totalorder %s20, 1
      %p37 = por %p35, %p36
      %p38 = scmp.ne.s32.totalorder %s30, %s33
      %p39 = scmp.eq.s32.totalorder %s20, 0
      %p40 = por %p38, %p39
      %p41 = scmp.ne.s32.totalorder %s30, %s33
      %p42 = scmp.eq.s32.totalorder %s25, 1
      %p43 = por %p41, %p42
      %p44 = scmp.ne.s32.totalorder %s33, %s34
      %p45 = scmp.eq.s32.totalorder %s25, 0
      %p46 = por %p44, %p45
      %p47 = scmp.ne.s32.totalorder %s33, %s34
      %p48 = scmp.eq.s32.totalorder %s26, 1
      %p49 = por %p47, %p48
      %p51 = scmp.ne.s32.totalorder %s34, %s50
      %p52 = scmp.eq.s32.totalorder %s26, 0
      %p53 = por %p51, %p52
      %s55 = sadd.s32 %s54, 1
      %p58 = scmp.eq.s32.totalorder %s20, 1
      %p59 = scmp.ne.s32.totalorder %s54, %s56
      %p60 = scmp.eq.s32.totalorder %s20, 0
      %p61 = por %p59, %p60
      %p62 = scmp.ne.s32.totalorder %s54, %s56
      %p63 = scmp.eq.s32.totalorder %s25, 1
      %p64 = por %p62, %p63
      %p65 = scmp.ne.s32.totalorder %s56, %s57
      %p66 = scmp.eq.s32.totalorder %s25, 0
      %p67 = por %p65, %p66
      %p68 = scmp.ne.s32.totalorder %s56, %s57
      %p69 = scmp.eq.s32.totalorder %s26, 1
      %p70 = por %p68, %p69
      %p72 = scmp.ne.s32.totalorder %s57, %s71
      %p73 = scmp.eq.s32.totalorder %s26, 0
      %p74 = por %p72, %p73
      %s76 = sadd.s32 %s75, 1
      %p79 = scmp.eq.s32.totalorder %s20, 1
      %p80 = scmp.ne.s32.totalorder %s75, %s77
      %p81 = scmp.eq.s32.totalorder %s20, 0
      %p82 = por %p80, %p81
      %p83 = scmp.ne.s32.totalorder %s75, %s77
      %p84 = scmp.eq.s32.totalorder %s25, 1
      %p85 = por %p83, %p84
      %p86 = scmp.ne.s32.totalorder %s77, %s78
      %p87 = scmp.eq.s32.totalorder %s25, 0
      %p88 = por %p86, %p87
      %p89 = scmp.ne.s32.totalorder %s77, %s78
      %p90 = scmp.eq.s32.totalorder %s26, 1
      %p91 = por %p89, %p90
      %p93 = scmp.ne.s32.totalorder %s78, %s92
      %p94 = scmp.eq.s32.totalorder %s26, 0
      %p95 = por %p93, %p94
      %s96 = ssub.s32 %s20, %s27
      %p97 = scmp.eq.s32.totalorder %s96, 0
      %s99 = sadd.s32 %s98, 1
      %s100 = scalar_select %p97, %s98, %s99
      %p103 = pneg %p97
      %p104 = scmp.eq.s32.totalorder %s20, 1
      %p105 = por %p103, %p104
      %p106 = scmp.ne.s32.totalorder %s98, %s101
      %p107 = scmp.eq.s32.totalorder %s20, 0
      %p108 = por %p106, %p107
      %p109 = scmp.ne.s32.totalorder %s98, %s101
      %p110 = scmp.eq.s32.totalorder %s25, 1
      %p111 = por %p109, %p110
      %p112 = scmp.ne.s32.totalorder %s101, %s102
      %p113 = scmp.eq.s32.totalorder %s25, 0
      %p114 = por %p112, %p113
      %p115 = scmp.ne.s32.totalorder %s101, %s102
      %p116 = scmp.eq.s32.totalorder %s26, 1
      %p117 = por %p115, %p116
      %p119 = scmp.ne.s32.totalorder %s102, %s118
      %p120 = scmp.eq.s32.totalorder %s26, 0
      %p121 = por %p119, %p120
      %s122 = ssub.s32 %s20, %s27
      %p123 = scmp.eq.s32.totalorder %s122, 0
      %s125 = sadd.s32 %s124, 1
      %s126 = scalar_select %p123, %s124, %s125
      %p129 = pneg %p123
      %p130 = scmp.eq.s32.totalorder %s20, 1
      %p131 = por %p129, %p130
      %p132 = scmp.ne.s32.totalorder %s124, %s127
      %p133 = scmp.eq.s32.totalorder %s20, 0
      %p134 = por %p132, %p133
      %p135 = scmp.ne.s32.totalorder %s124, %s127
      %p136 = scmp.eq.s32.totalorder %s25, 1
      %p137 = por %p135, %p136
      %p138 = scmp.ne.s32.totalorder %s127, %s128
      %p139 = scmp.eq.s32.totalorder %s25, 0
      %p140 = por %p138, %p139
      %p141 = scmp.ne.s32.totalorder %s127, %s128
      %p142 = scmp.eq.s32.totalorder %s26, 1
      %p143 = por %p141, %p142
      %p145 = scmp.ne.s32.totalorder %s128, %s144
      %p146 = scmp.eq.s32.totalorder %s26, 0
      %p147 = por %p145, %p146
      %p148 = scmp.le.s32.totalorder 1, %s20
      %p149 = scmp.lt.s32.totalorder %s20, 3
      %p150 = pnand %p148, %p149
      %p151 = pneg %p150
      // Predicated region
      $region9: #{tpu_custom_call.1} parent=5 // pred_check
        _
      $region10: #{tpu_custom_call.1} parent=5 // pred_check_branch
        %153 = sbr.rel (%p150) target = $region12
      $region11: #{tpu_custom_call.1} parent=5 // pred_region
        %s154 = ssub.s32 %s20, 1
        // Predicated region
        $region13: #{tpu_custom_call.1} parent=11 // pred_check
          %p155 = pneg %p67
        $region14: #{tpu_custom_call.1} parent=11 // pred_check_branch
          %157 = sbr.rel (%p155) target = $region16
        $region15: #{tpu_custom_call.1} parent=11 // pred_region
          %s159 = ssub.s32 256, 256
          %160 = vsyncadd [#allocation6], %s159
          %s161 = sshll.u32 [#allocation5], 4
          %s162 = int_to_ptr.vmem [resolvable:$true] %s161
          %167 = dma.hbm_to_vmem [thread:$0]  %s1, 256, %s162, [#allocation6], 64, 64, 4
        $region16: #{tpu_custom_call.1} parent=11 // pred_fallthru
          _
        // Predicated region
        $region17: #{tpu_custom_call.1} parent=11 // pred_check
          %p168 = pneg %p88
        $region18: #{tpu_custom_call.1} parent=11 // pred_check_branch
          %170 = sbr.rel (%p168) target = $region20
        $region19: #{tpu_custom_call.1} parent=11 // pred_region
          %s172 = ssub.s32 64, 64
          %173 = vsyncadd [#allocation6], %s172
          %s175 = sshll.u32 [#allocation7], 4
          %s176 = int_to_ptr.vmem [resolvable:$true] %s175
          %178 = dma.hbm_to_vmem [thread:$0]  %s2, 64, %s176, [#allocation6]
        $region20: #{tpu_custom_call.1} parent=11 // pred_fallthru
          _
      $region12: #{tpu_custom_call.1} parent=5 // pred_fallthru
        _
      %p179 = scmp.lt.s32.totalorder %s20, 2
      // Predicated region
      $region21: #{tpu_custom_call.1} parent=5 // pred_check
        %p180 = pneg %p179
      $region22: #{tpu_custom_call.1} parent=5 // pred_check_branch
        %182 = sbr.rel (%p180) target = $region24
      $region23: #{tpu_custom_call.1} parent=5 // pred_region
        // Predicated region
        $region25: #{tpu_custom_call.1} parent=23 // pred_check
          %p183 = pneg %p40
        $region26: #{tpu_custom_call.1} parent=23 // pred_check_branch
          %185 = sbr.rel (%p183) target = $region28
        $region27: #{tpu_custom_call.1} parent=23 // pred_region
          %s186 = sand.u32 %s30, 1
          %s187 = scalar_lea.sflag [#allocation3], %s186
          %s188 = sand.u32 %s30, 1
          %s189 = smul.addr %s188, 8
          %s190 = scalar_lea.vmem [#allocation2], %s189
          %s192 = ssub.s32 128, 128
          %193 = vsyncadd %s187, %s192
          %s194 = smul.addr %s20, 128
          %s195 = scalar_lea.hbm %s0, %s194
          %s197 = sshll.u32 %s190, 4
          %s198 = int_to_ptr.vmem [resolvable:$true] %s197
          %200 = dma.hbm_to_vmem [thread:$0]  %s195, 128, %s198, %s187
        $region28: #{tpu_custom_call.1} parent=23 // pred_fallthru
          _
        // Predicated region
        $region29: #{tpu_custom_call.1} parent=23 // pred_check
          %p201 = pneg %p108
        $region30: #{tpu_custom_call.1} parent=23 // pred_check_branch
          %203 = sbr.rel (%p201) target = $region32
        $region31: #{tpu_custom_call.1} parent=23 // pred_region
          %s204 = sand.u32 %s98, 1
          %s205 = scalar_lea.sflag [#allocation9], %s204
          %s206 = sand.u32 %s98, 1
          %s207 = smul.addr %s206, 8
          %s208 = scalar_lea.vmem [#allocation8], %s207
          %s210 = ssub.s32 128, 128
          %211 = vsyncadd %s205, %s210
          %s212 = smul.addr %s20, 128
          %s213 = scalar_lea.hbm %s3, %s212
          %s215 = sshll.u32 %s208, 4
          %s216 = int_to_ptr.vmem [resolvable:$true] %s215
          %218 = dma.hbm_to_vmem [thread:$0]  %s213, 128, %s216, %s205
        $region32: #{tpu_custom_call.1} parent=23 // pred_fallthru
          _
      $region24: #{tpu_custom_call.1} parent=5 // pred_fallthru
        _
      %p219 = scmp.le.s32.totalorder 1, %s20
      %p220 = scmp.lt.s32.totalorder %s20, 3
      %p221 = pnand %p219, %p220
      %p222 = pneg %p221
      // Predicated region
      $region33: #{tpu_custom_call.1} parent=5 // pred_check
        _
      $region34: #{tpu_custom_call.1} parent=5 // pred_check_branch
        %224 = sbr.rel (%p221) target = $region36
      $region35: #{tpu_custom_call.1} parent=5 // pred_region
        %s225 = ssub.s32 %s20, 1
        %s226 = sand.u32 %s33, 1
        %s227 = scalar_lea.sflag [#allocation3], %s226
        %s228 = sand.u32 %s33, 1
        %s229 = smul.addr %s228, 8
        %s230 = scalar_lea.vmem [#allocation2], %s229
        // Predicated region
        $region37: #{tpu_custom_call.1} parent=35 // pred_check
          %p231 = pneg %p46
        $region38: #{tpu_custom_call.1} parent=35 // pred_check_branch
          %233 = sbr.rel (%p231) target = $region40
        $region39: #{tpu_custom_call.1} parent=35 // pred_region
          %234 = dma.done %s227, 128
        $region40: #{tpu_custom_call.1} parent=35 // pred_fallthru
          _
        // Predicated region
        $region41: #{tpu_custom_call.1} parent=35 // pred_check
          %p235 = pneg %p67
        $region42: #{tpu_custom_call.1} parent=35 // pred_check_branch
          %237 = sbr.rel (%p235) target = $region44
        $region43: #{tpu_custom_call.1} parent=35 // pred_region
          %238 = dma.done [#allocation6], 256
        $region44: #{tpu_custom_call.1} parent=35 // pred_fallthru
          _
        // Predicated region
        $region45: #{tpu_custom_call.1} parent=35 // pred_check
          %p239 = pneg %p88
        $region46: #{tpu_custom_call.1} parent=35 // pred_check_branch
          %241 = sbr.rel (%p239) target = $region48
        $region47: #{tpu_custom_call.1} parent=35 // pred_region
          %242 = dma.done [#allocation6], 64
        $region48: #{tpu_custom_call.1} parent=35 // pred_fallthru
          _
        %s243 = sand.u32 %s101, 1
        %s244 = scalar_lea.sflag [#allocation9], %s243
        %s245 = sand.u32 %s101, 1
        %s246 = smul.addr %s245, 8
        %s247 = scalar_lea.vmem [#allocation8], %s246
        // Predicated region
        $region49: #{tpu_custom_call.1} parent=35 // pred_check
          %p248 = pneg %p114
        $region50: #{tpu_custom_call.1} parent=35 // pred_check_branch
          %250 = sbr.rel (%p248) target = $region52
        $region51: #{tpu_custom_call.1} parent=35 // pred_region
          %251 = dma.done %s244, 128
        $region52: #{tpu_custom_call.1} parent=35 // pred_fallthru
          _
        %s252 = sand.u32 %s33, 1
        %s253 = scalar_lea.sflag [#allocation3], %s252
        %s254 = sand.u32 %s33, 1
        %s255 = smul.addr %s254, 8
        %s256 = scalar_lea.vmem [#allocation2], %s255
        %p257 = pneg %p46
        %p258 = pneg %p43
        %p259 = pneg %p67
        %p260 = pneg %p64
        %p261 = pneg %p88
        %p262 = pneg %p85
        %s263 = sand.u32 %s101, 1
        %s264 = scalar_lea.sflag [#allocation9], %s263
        %s265 = sand.u32 %s101, 1
        %s266 = smul.addr %s265, 8
        %s267 = scalar_lea.vmem [#allocation8], %s266
        %p268 = pneg %p114
        %p269 = pneg %p111
        %p270 = pneg %p140
        %p271 = pneg %p137
        %s272 = sand.u32 %s127, 1
        %s273 = scalar_lea.sflag [#allocation4], %s272
        %s274 = sand.u32 %s127, 1
        %s275 = smul.addr %s274, 8
        %s276 = scalar_lea.vmem [#allocation10], %s275
        %v278 = vld [vmem:[%s230] sm:$0xff]
        %v279 = vpack.c.bf16 %v278, %v278
        %v280 = vld [vmem:[#allocation5] sm:$0xf]
        %v281 = vld [vmem:[#allocation5 + $0x4] sm:$0xf]
        %v282 = vld [vmem:[#allocation5 + $0x8] sm:$0xf]
        %v283 = vld [vmem:[#allocation5 + $0xc] sm:$0xf]
        %v284 = vld [vmem:[#allocation7] sm:$0x7]
        %v285 = vlaneseq
        %v286 = vshrl.u32 %v285, 7
        %v287 = vsub.s32 0, %v286
        %v288 = vrot.slane %v284, %v287
        %v293 = vunpack.c.l.b16 %v280
        %v294 = vunpack.c.l.b16 %v281
        %v295 = vunpack.c.l.b16 %v282
        %v296 = vunpack.c.l.b16 %v283
        %v297 = vpack.c.b16 %v294, %v293
        %v298 = vpack.c.b16 %v296, %v295
        %vm301 = vcmask 261120
        %v303 = vsel %vm301, %v279, 0
        %305 = vmatprep.subr.bf16.mxu0 0
        %306 = vmatpush1.bf16.msra.mxu0 0
        %307 = vmatprep.subr.bf16.mxu0 0
        %308 = vmatpush1.bf16.msra.mxu0 0
        %309 = vmatprep.subr.bf16.mxu0 0
        %310 = vmatpush1.bf16.msra.mxu0 0
        %311 = vmatprep.subr.bf16.mxu0 0
        %312 = vmatpush1.bf16.msra.mxu0 0
        %313 = vmatprep.subr.bf16.mxu0 0
        %314 = vmatpush1.bf16.msra.mxu0 0
        %315 = vmatprep.subr.bf16.mxu0 0
        %316 = vmatpush1.bf16.msra.mxu0 0
        %317 = vmatprep.subr.bf16.mxu0 0
        %318 = vmatpush1.bf16.msra.mxu0 %v298
        %319 = vmatprep.subr.bf16.mxu0 0
        %320 = vmatpush1.bf16.msra.mxu0 %v297
        %321 = vmatprep.subr.bf16.mxu0 0
        %322 = vmatpush2.bf16.msra.mxu0 0
        %323 = vmatprep.subr.bf16.mxu0 0
        %324 = vmatpush2.bf16.msra.mxu0 0
        %325 = vmatprep.subr.bf16.mxu0 0
        %326 = vmatpush2.bf16.msra.mxu0 0
        %327 = vmatprep.subr.bf16.mxu0 0
        %328 = vmatpush2.bf16.msra.mxu0 0
        %329 = vmatprep.subr.bf16.mxu0 0
        %330 = vmatpush2.bf16.msra.mxu0 0
        %331 = vmatprep.subr.bf16.mxu0 0
        %332 = vmatpush2.bf16.msra.mxu0 0
        %333 = vmatprep.subr.bf16.mxu0 0
        %334 = vmatpush2.bf16.msra.mxu0 0
        %335 = vmatprep.subr.bf16.mxu0 0
        %336 = vmatpush2.bf16.msra.mxu0 0
        %337 = vmatprep.mubr.bf16.mxu0 0
        %338 = vmatmul.mubr.bf16.gmra.mxu0 %v303
        %v339 = vpop.f32.mrf.mxu0
        %v340 = vadd.f32 %v288, %v339
        %v341 = vpop.f32.mrf.mxu0
        %v342 = vpop.f32.mrf.mxu0
        %v343 = vpop.f32.mrf.mxu0
        %344 = vdwg.mxu0
        %v345 = vld [vmem:[%s247] sm:$0xff]
        %v346 = vadd.f32 %v340, %v345
        %v347 = vsel %vm301, %v346, 0.0
        %348 = vadd.xlane.f32.xlu0 %v347
        %v349 = vpop.xlane.xlu0 %348
        %v350 = vmul.f32 %v346, %v346
        %v351 = vsel %vm301, %v350, 0.0
        %352 = vadd.xlane.f32.xlu0 %v351
        %v353 = vpop.xlane.xlu0 %352
        %v354 = vmul.f32 %v349, 0.03125
        %v355 = vmul.f32 %v353, 0.03125
        %v356 = vmul.f32 %v354, %v354
        %v357 = vsub.f32 %v355, %v356
        %v358 = vmax.f32 %v357, 0.0
        %v359 = vsub.f32 %v346, %v354
        %v360 = vadd.f32 %v358, 1e-12
        %v361 = vrsqrt.pop %v360
        %v362 = vmul.f32 %v359, %v361
        %v363 = vlaneseq
        %v364 = vshrl.u32 %v363, 7
        %v365 = vsub.s32 1, %v364
        %v366 = vrot.slane %v284, %v365
        %v367 = vmul.f32 %v362, %v366
        %v368 = vlaneseq
        %v369 = vshrl.u32 %v368, 7
        %v370 = vsub.s32 2, %v369
        %v371 = vrot.slane %v284, %v370
        %v372 = vadd.f32 %v367, %v371
        %373 = vst.msk [vmem:[%s276] sm:$0xff] %vm301, %v372
        %s374 = sand.u32 %s127, 1
        %s375 = scalar_lea.sflag [#allocation4], %s374
        %s376 = sand.u32 %s127, 1
        %s377 = smul.addr %s376, 8
        %s378 = scalar_lea.vmem [#allocation10], %s377
        // Predicated region
        $region53: #{tpu_custom_call.1} parent=35 // pred_check
          %p379 = pneg %p137
        $region54: #{tpu_custom_call.1} parent=35 // pred_check_branch
          %381 = sbr.rel (%p379) target = $region56
        $region55: #{tpu_custom_call.1} parent=35 // pred_region
          %s383 = ssub.s32 128, 128
          %384 = vsyncadd %s375, %s383
          %s385 = smul.addr %s25, 128
          %s386 = scalar_lea.hbm %s4, %s385
          %s388 = sshll.u32 %s378, 4
          %s389 = int_to_ptr.vmem [resolvable:$true] %s388
          %391 = dma.vmem_to_hbm [thread:$0]  %s389, 128, %s386, %s375
        $region56: #{tpu_custom_call.1} parent=35 // pred_fallthru
          _
      $region36: #{tpu_custom_call.1} parent=5 // pred_fallthru
        _
      %p392 = scmp.le.s32.totalorder 2, %s20
      // Predicated region
      $region57: #{tpu_custom_call.1} parent=5 // pred_check
        %p393 = pneg %p392
      $region58: #{tpu_custom_call.1} parent=5 // pred_check_branch
        %395 = sbr.rel (%p393) target = $region60
      $region59: #{tpu_custom_call.1} parent=5 // pred_region
        %s396 = ssub.s32 %s20, 2
        // Predicated region
        $region61: #{tpu_custom_call.1} parent=59 // pred_check
          %p397 = pneg %p143
        $region62: #{tpu_custom_call.1} parent=59 // pred_check_branch
          %399 = sbr.rel (%p397) target = $region64
        $region63: #{tpu_custom_call.1} parent=59 // pred_region
          %s400 = sand.u32 %s128, 1
          %s401 = scalar_lea.sflag [#allocation4], %s400
          %s402 = sand.u32 %s128, 1
          %s403 = smul.addr %s402, 8
          %s404 = scalar_lea.vmem [#allocation10], %s403
          %405 = dma.done %s401, 128
        $region64: #{tpu_custom_call.1} parent=59 // pred_fallthru
          _
      $region60: #{tpu_custom_call.1} parent=5 // pred_fallthru
        _
    $region6: #{tpu_custom_call.1} parent=1 // loop_footer
      %s24 = sadd.s32 1, %s20
    $region7: #{tpu_custom_call.1} parent=1 // loop_footer_branch
      %19 = sbr.rel target = $region3
    $region8: #{tpu_custom_call.1} parent=1 // loop_exit
      _
    %406 = vsyncpa [#allocation3], 1
    %s407 = scalar_lea.sflag [#allocation3], 1
    %408 = vsyncpa %s407, 1
    %409 = vsyncpa [#allocation6], 1
    %410 = vsyncpa [#allocation9], 1
    %s411 = scalar_lea.sflag [#allocation9], 1
    %412 = vsyncpa %s411, 1
    %413 = vsyncpa [#allocation4], 1
    %s414 = scalar_lea.sflag [#allocation4], 1
    %415 = vsyncpa %s414, 1

</llo_original>
